<compile_context>
chip_gen: v7x
topology: tpu7x:2x2x1
jax: 0.10.0
libtpu: 0.0.40
codegen_flags: <defaults>
</compile_context>

<pallas_src>
import functools

import jax
import jax.numpy as jnp
from jax import lax
from jax.experimental import pallas as pl
from jax.experimental.pallas import tpu as pltpu

IN_FEATURES = 4
HIDDEN = 20
LANES = 128
SUBLANES = 8
ROW_GRANULE = LANES * SUBLANES        # 1024 rows: smallest legal batch tile
MAX_TILE_B = 65536                    # up to 512 sublane rows per grid step
CHUNK_ROWS = 32                       # inner-chunk sublane rows (~24 live vregs)


def _mlp_kernel(w1_ref, b1_ref, w2_ref, b2_ref, x_ref, o_ref, *, chunk_rows):
    """One batch tile of the MLP, entirely on the VPU.

    x_ref : (4, R, 128) f32 VMEM  -- batch on sublanes x lanes, per input feature
    o_ref : (R, 128)    f32 VMEM  -- lane-dense output slab
    w1_ref: (80,) f32 SMEM  (row-major (hidden, in))
    b1_ref: (20,) f32 SMEM
    w2_ref: (20,) f32 SMEM
    b2_ref: (1,)  f32 SMEM
    """
    n_chunks = o_ref.shape[0] // chunk_rows

    def body(c, carry):
        r0 = pl.multiple_of(c * chunk_rows, chunk_rows)
        # Load each feature as its own (chunk_rows, 128) slab: working set stays
        # ~4*chunk_rows/8 + 2*chunk_rows/8 vregs, well inside the vreg file.
        xs = [x_ref[k, pl.ds(r0, chunk_rows), :] for k in range(IN_FEATURES)]

        acc = None
        for j in range(HIDDEN):                     # unrolled: 20 hidden units
            # No bias splat: b1[j] is a scalar add operand.
            h = xs[0] * w1_ref[j * IN_FEATURES] + b1_ref[j]
            for k in range(1, IN_FEATURES):         # unrolled: 3 more features
                h = h + xs[k] * w1_ref[j * IN_FEATURES + k]
            h = jnp.maximum(h, 0.0)                 # ReLU (layer 1)
            t = h * w2_ref[j]                       # layer 2 contribution
            acc = t if acc is None else acc + t
        # Single scalar b2 add + final ReLU, then one dense chunk store.
        o_ref[pl.ds(r0, chunk_rows), :] = jnp.maximum(acc + b2_ref[0], 0.0)
        return carry

    lax.fori_loop(0, n_chunks, body, 0)


def _round_up(n, m):
    return ((n + m - 1) // m) * m


@jax.jit
def baseline_value_forward(x, w1, b1, w2, b2):
    """x: (B, 4) f32 -> (B, 1) f32, replicating BaselineValue.forward.

    Weights use the torch.nn.Linear layout: w1 (20, 4), b1 (20,), w2 (1, 20), b2 (1,).
    """
    B, F = x.shape
    assert F == IN_FEATURES

    # Tile selection (all Python ints at trace time):
    #  * never smaller than the 1024-row legal minimum (so B=8 pads only to 1024),
    #  * never larger than 64K rows,
    #  * aim for >=2 grid steps when B allows it (v7x dual-TensorCore sharding).
    target = _round_up(max(1, -(-B // 2)), ROW_GRANULE)
    tile_b = max(ROW_GRANULE, min(MAX_TILE_B, target))
    n_tiles = -(-B // tile_b)
    b_pad = n_tiles * tile_b
    rows = b_pad // LANES
    tile_rows = tile_b // LANES                     # multiple of 8 by construction
    # Inner chunk size must divide tile_rows; tile_rows is always a multiple of 8.
    chunk_rows = next(c for c in (CHUNK_ROWS, 16, 8) if tile_rows % c == 0)

    # Pad batch and lay it out on (sublane, lane): (4, rows, 128).
    # NOTE(v5e): this transpose is a separate XLA HBM pass comparable to the
    # kernel's own traffic on v5e; if the caller can provide features-major
    # (4, B) data upstream, feed it here directly and skip the .T.
    x_pad = jnp.pad(x.astype(jnp.float32), ((0, b_pad - B), (0, 0)))
    x_t = x_pad.T.reshape(F, rows, LANES)

    smem = pl.BlockSpec(memory_space=pltpu.MemorySpace.SMEM)
    kernel = functools.partial(_mlp_kernel, chunk_rows=chunk_rows)

    out = pl.pallas_call(
        kernel,
        out_shape=jax.ShapeDtypeStruct((rows, LANES), jnp.float32),
        grid=(n_tiles,),
        in_specs=[
            smem,                                            # w1 (80,)
            smem,                                            # b1 (20,)
            smem,                                            # w2 (20,)
            smem,                                            # b2 (1,)
            pl.BlockSpec((F, tile_rows, LANES), lambda i: (0, i, 0)),
        ],
        out_specs=pl.BlockSpec((tile_rows, LANES), lambda i: (i, 0)),
        compiler_params=pltpu.CompilerParams(
            dimension_semantics=("parallel",),
        ),
    )(
        w1.reshape(-1).astype(jnp.float32),
        b1.reshape(-1).astype(jnp.float32),
        w2.reshape(-1).astype(jnp.float32),
        b2.reshape(-1).astype(jnp.float32),
        x_t,
    )
    # Lane-dense (rows, 128) slab -> exact (B, 1) result.
    return out.reshape(b_pad, 1)[:B]


def _reference(x, w1, b1, w2, b2):
    h = jnp.maximum(x @ w1.T + b1, 0.0)
    return jnp.maximum(h @ w2.T + b2, 0.0)


def init_params(key):
    """Deterministic init matching torch.nn.Linear's U(-1/sqrt(fan_in), 1/sqrt(fan_in))."""
    k1, k2, k3, k4 = jax.random.split(key, 4)
    bound1 = 1.0 / (IN_FEATURES ** 0.5)
    bound2 = 1.0 / (HIDDEN ** 0.5)
    w1 = jax.random.uniform(k1, (HIDDEN, IN_FEATURES), jnp.float32, -bound1, bound1)
    b1 = jax.random.uniform(k2, (HIDDEN,), jnp.float32, -bound1, bound1)
    w2 = jax.random.uniform(k3, (1, HIDDEN), jnp.float32, -bound2, bound2)
    b2 = jax.random.uniform(k4, (1,), jnp.float32, -bound2, bound2)
    return w1, b1, w2, b2


if __name__ == "__main__":
    key = jax.random.PRNGKey(0)
    pkey, xkey, xkey2 = jax.random.split(key, 3)
    w1, b1, w2, b2 = init_params(pkey)

    # Small observation batch, 4 features each (matches the module's Linear(4, ...)).
    x = jax.random.normal(xkey, (8, IN_FEATURES), dtype=jnp.float32)
    out = jax.block_until_ready(baseline_value_forward(x, w1, b1, w2, b2))
    ref = _reference(x, w1, b1, w2, b2)
    assert out.shape == (8, 1)
    assert jnp.allclose(out, ref, atol=1e-5, rtol=1e-5)

    # Multi-tile / non-multiple-of-tile batch to exercise the grid, the inner
    # chunk loop and the padding path (tile_b clamps to 3072 -> 2 grid steps).
    x_big = jax.random.normal(xkey2, (4500, IN_FEATURES), dtype=jnp.float32)
    out_big = jax.block_until_ready(baseline_value_forward(x_big, w1, b1, w2, b2))
    ref_big = _reference(x_big, w1, b1, w2, b2)
    assert out_big.shape == (4500, 1)
    assert jnp.allclose(out_big, ref_big, atol=1e-5, rtol=1e-5)

    print("KERNEL_OK")
</pallas_src>

<mosaic_0001>
module attributes {stable_mosaic.version = 11 : i64} {
  func.func @_mlp_kernel(%arg0: i32, %arg1: memref<80xf32, #tpu.memory_space<smem>>, %arg2: memref<20xf32, #tpu.memory_space<smem>>, %arg3: memref<20xf32, #tpu.memory_space<smem>>, %arg4: memref<1xf32, #tpu.memory_space<smem>>, %arg5: memref<4x8x128xf32, #tpu.memory_space<vmem>>, %arg6: memref<8x128xf32, #tpu.memory_space<vmem>>) attributes {dimension_semantics = [#tpu.dimension_semantics<parallel>], iteration_bounds = array<i64: 1>, scalar_prefetch = 0 : i64, scratch_operands = 0 : i64, tpu.core_type = #tpu.core_type<tc>, window_params = [{transform_indices = @transform_0, window_bounds = array<i64: 80>}, {transform_indices = @transform_1, window_bounds = array<i64: 20>}, {transform_indices = @transform_2, window_bounds = array<i64: 20>}, {transform_indices = @transform_3, window_bounds = array<i64: 1>}, {transform_indices = @transform_4, window_bounds = array<i64: 4, 8, 128>}, {transform_indices = @transform_5, window_bounds = array<i64: 8, 128>}]} {
    %c0_i32 = arith.constant 0 : i32
    %c8_i32 = arith.constant 8 : i32
    %0 = arith.muli %c0_i32, %c8_i32 : i32
    %1 = tpu.assume_multiple %0, 8 : i32
    %c0 = arith.constant 0 : index
    %2 = arith.index_cast %1 : i32 to index
    %c0_0 = arith.constant 0 : index
    %3 = vector.load %arg5[%c0, %2, %c0_0] : memref<4x8x128xf32, #tpu.memory_space<vmem>>, vector<1x8x128xf32>
    %4 = vector.shape_cast %3 : vector<1x8x128xf32> to vector<8x128xf32>
    %c1 = arith.constant 1 : index
    %5 = arith.index_cast %1 : i32 to index
    %c0_1 = arith.constant 0 : index
    %6 = vector.load %arg5[%c1, %5, %c0_1] : memref<4x8x128xf32, #tpu.memory_space<vmem>>, vector<1x8x128xf32>
    %7 = vector.shape_cast %6 : vector<1x8x128xf32> to vector<8x128xf32>
    %c2 = arith.constant 2 : index
    %8 = arith.index_cast %1 : i32 to index
    %c0_2 = arith.constant 0 : index
    %9 = vector.load %arg5[%c2, %8, %c0_2] : memref<4x8x128xf32, #tpu.memory_space<vmem>>, vector<1x8x128xf32>
    %10 = vector.shape_cast %9 : vector<1x8x128xf32> to vector<8x128xf32>
    %c3 = arith.constant 3 : index
    %11 = arith.index_cast %1 : i32 to index
    %c0_3 = arith.constant 0 : index
    %12 = vector.load %arg5[%c3, %11, %c0_3] : memref<4x8x128xf32, #tpu.memory_space<vmem>>, vector<1x8x128xf32>
    %13 = vector.shape_cast %12 : vector<1x8x128xf32> to vector<8x128xf32>
    %c0_4 = arith.constant 0 : index
    %14 = memref.load %arg1[%c0_4] : memref<80xf32, #tpu.memory_space<smem>>
    %15 = vector.broadcast %14 : f32 to vector<8x128xf32>
    %16 = arith.mulf %4, %15 : vector<8x128xf32>
    %c0_5 = arith.constant 0 : index
    %17 = memref.load %arg2[%c0_5] : memref<20xf32, #tpu.memory_space<smem>>
    %18 = vector.broadcast %17 : f32 to vector<8x128xf32>
    %19 = arith.addf %16, %18 : vector<8x128xf32>
    %c1_6 = arith.constant 1 : index
    %20 = memref.load %arg1[%c1_6] : memref<80xf32, #tpu.memory_space<smem>>
    %21 = vector.broadcast %20 : f32 to vector<8x128xf32>
    %22 = arith.mulf %7, %21 : vector<8x128xf32>
    %23 = arith.addf %19, %22 : vector<8x128xf32>
    %c2_7 = arith.constant 2 : index
    %24 = memref.load %arg1[%c2_7] : memref<80xf32, #tpu.memory_space<smem>>
    %25 = vector.broadcast %24 : f32 to vector<8x128xf32>
    %26 = arith.mulf %10, %25 : vector<8x128xf32>
    %27 = arith.addf %23, %26 : vector<8x128xf32>
    %c3_8 = arith.constant 3 : index
    %28 = memref.load %arg1[%c3_8] : memref<80xf32, #tpu.memory_space<smem>>
    %29 = vector.broadcast %28 : f32 to vector<8x128xf32>
    %30 = arith.mulf %13, %29 : vector<8x128xf32>
    %31 = arith.addf %27, %30 : vector<8x128xf32>
    %cst = arith.constant 0.000000e+00 : f32
    %32 = vector.broadcast %cst : f32 to vector<8x128xf32>
    %33 = arith.maximumf %31, %32 : vector<8x128xf32>
    %c0_9 = arith.constant 0 : index
    %34 = memref.load %arg3[%c0_9] : memref<20xf32, #tpu.memory_space<smem>>
    %35 = vector.broadcast %34 : f32 to vector<8x128xf32>
    %36 = arith.mulf %33, %35 : vector<8x128xf32>
    %c4 = arith.constant 4 : index
    %37 = memref.load %arg1[%c4] : memref<80xf32, #tpu.memory_space<smem>>
    %38 = vector.broadcast %37 : f32 to vector<8x128xf32>
    %39 = arith.mulf %4, %38 : vector<8x128xf32>
    %c1_10 = arith.constant 1 : index
    %40 = memref.load %arg2[%c1_10] : memref<20xf32, #tpu.memory_space<smem>>
    %41 = vector.broadcast %40 : f32 to vector<8x128xf32>
    %42 = arith.addf %39, %41 : vector<8x128xf32>
    %c5 = arith.constant 5 : index
    %43 = memref.load %arg1[%c5] : memref<80xf32, #tpu.memory_space<smem>>
    %44 = vector.broadcast %43 : f32 to vector<8x128xf32>
    %45 = arith.mulf %7, %44 : vector<8x128xf32>
    %46 = arith.addf %42, %45 : vector<8x128xf32>
    %c6 = arith.constant 6 : index
    %47 = memref.load %arg1[%c6] : memref<80xf32, #tpu.memory_space<smem>>
    %48 = vector.broadcast %47 : f32 to vector<8x128xf32>
    %49 = arith.mulf %10, %48 : vector<8x128xf32>
    %50 = arith.addf %46, %49 : vector<8x128xf32>
    %c7 = arith.constant 7 : index
    %51 = memref.load %arg1[%c7] : memref<80xf32, #tpu.memory_space<smem>>
    %52 = vector.broadcast %51 : f32 to vector<8x128xf32>
    %53 = arith.mulf %13, %52 : vector<8x128xf32>
    %54 = arith.addf %50, %53 : vector<8x128xf32>
    %cst_11 = arith.constant 0.000000e+00 : f32
    %55 = vector.broadcast %cst_11 : f32 to vector<8x128xf32>
    %56 = arith.maximumf %54, %55 : vector<8x128xf32>
    %c1_12 = arith.constant 1 : index
    %57 = memref.load %arg3[%c1_12] : memref<20xf32, #tpu.memory_space<smem>>
    %58 = vector.broadcast %57 : f32 to vector<8x128xf32>
    %59 = arith.mulf %56, %58 : vector<8x128xf32>
    %60 = arith.addf %36, %59 : vector<8x128xf32>
    %c8 = arith.constant 8 : index
    %61 = memref.load %arg1[%c8] : memref<80xf32, #tpu.memory_space<smem>>
    %62 = vector.broadcast %61 : f32 to vector<8x128xf32>
    %63 = arith.mulf %4, %62 : vector<8x128xf32>
    %c2_13 = arith.constant 2 : index
    %64 = memref.load %arg2[%c2_13] : memref<20xf32, #tpu.memory_space<smem>>
    %65 = vector.broadcast %64 : f32 to vector<8x128xf32>
    %66 = arith.addf %63, %65 : vector<8x128xf32>
    %c9 = arith.constant 9 : index
    %67 = memref.load %arg1[%c9] : memref<80xf32, #tpu.memory_space<smem>>
    %68 = vector.broadcast %67 : f32 to vector<8x128xf32>
    %69 = arith.mulf %7, %68 : vector<8x128xf32>
    %70 = arith.addf %66, %69 : vector<8x128xf32>
    %c10 = arith.constant 10 : index
    %71 = memref.load %arg1[%c10] : memref<80xf32, #tpu.memory_space<smem>>
    %72 = vector.broadcast %71 : f32 to vector<8x128xf32>
    %73 = arith.mulf %10, %72 : vector<8x128xf32>
    %74 = arith.addf %70, %73 : vector<8x128xf32>
    %c11 = arith.constant 11 : index
    %75 = memref.load %arg1[%c11] : memref<80xf32, #tpu.memory_space<smem>>
    %76 = vector.broadcast %75 : f32 to vector<8x128xf32>
    %77 = arith.mulf %13, %76 : vector<8x128xf32>
    %78 = arith.addf %74, %77 : vector<8x128xf32>
    %cst_14 = arith.constant 0.000000e+00 : f32
    %79 = vector.broadcast %cst_14 : f32 to vector<8x128xf32>
    %80 = arith.maximumf %78, %79 : vector<8x128xf32>
    %c2_15 = arith.constant 2 : index
    %81 = memref.load %arg3[%c2_15] : memref<20xf32, #tpu.memory_space<smem>>
    %82 = vector.broadcast %81 : f32 to vector<8x128xf32>
    %83 = arith.mulf %80, %82 : vector<8x128xf32>
    %84 = arith.addf %60, %83 : vector<8x128xf32>
    %c12 = arith.constant 12 : index
    %85 = memref.load %arg1[%c12] : memref<80xf32, #tpu.memory_space<smem>>
    %86 = vector.broadcast %85 : f32 to vector<8x128xf32>
    %87 = arith.mulf %4, %86 : vector<8x128xf32>
    %c3_16 = arith.constant 3 : index
    %88 = memref.load %arg2[%c3_16] : memref<20xf32, #tpu.memory_space<smem>>
    %89 = vector.broadcast %88 : f32 to vector<8x128xf32>
    %90 = arith.addf %87, %89 : vector<8x128xf32>
    %c13 = arith.constant 13 : index
    %91 = memref.load %arg1[%c13] : memref<80xf32, #tpu.memory_space<smem>>
    %92 = vector.broadcast %91 : f32 to vector<8x128xf32>
    %93 = arith.mulf %7, %92 : vector<8x128xf32>
    %94 = arith.addf %90, %93 : vector<8x128xf32>
    %c14 = arith.constant 14 : index
    %95 = memref.load %arg1[%c14] : memref<80xf32, #tpu.memory_space<smem>>
    %96 = vector.broadcast %95 : f32 to vector<8x128xf32>
    %97 = arith.mulf %10, %96 : vector<8x128xf32>
    %98 = arith.addf %94, %97 : vector<8x128xf32>
    %c15 = arith.constant 15 : index
    %99 = memref.load %arg1[%c15] : memref<80xf32, #tpu.memory_space<smem>>
    %100 = vector.broadcast %99 : f32 to vector<8x128xf32>
    %101 = arith.mulf %13, %100 : vector<8x128xf32>
    %102 = arith.addf %98, %101 : vector<8x128xf32>
    %cst_17 = arith.constant 0.000000e+00 : f32
    %103 = vector.broadcast %cst_17 : f32 to vector<8x128xf32>
    %104 = arith.maximumf %102, %103 : vector<8x128xf32>
    %c3_18 = arith.constant 3 : index
    %105 = memref.load %arg3[%c3_18] : memref<20xf32, #tpu.memory_space<smem>>
    %106 = vector.broadcast %105 : f32 to vector<8x128xf32>
    %107 = arith.mulf %104, %106 : vector<8x128xf32>
    %108 = arith.addf %84, %107 : vector<8x128xf32>
    %c16 = arith.constant 16 : index
    %109 = memref.load %arg1[%c16] : memref<80xf32, #tpu.memory_space<smem>>
    %110 = vector.broadcast %109 : f32 to vector<8x128xf32>
    %111 = arith.mulf %4, %110 : vector<8x128xf32>
    %c4_19 = arith.constant 4 : index
    %112 = memref.load %arg2[%c4_19] : memref<20xf32, #tpu.memory_space<smem>>
    %113 = vector.broadcast %112 : f32 to vector<8x128xf32>
    %114 = arith.addf %111, %113 : vector<8x128xf32>
    %c17 = arith.constant 17 : index
    %115 = memref.load %arg1[%c17] : memref<80xf32, #tpu.memory_space<smem>>
    %116 = vector.broadcast %115 : f32 to vector<8x128xf32>
    %117 = arith.mulf %7, %116 : vector<8x128xf32>
    %118 = arith.addf %114, %117 : vector<8x128xf32>
    %c18 = arith.constant 18 : index
    %119 = memref.load %arg1[%c18] : memref<80xf32, #tpu.memory_space<smem>>
    %120 = vector.broadcast %119 : f32 to vector<8x128xf32>
    %121 = arith.mulf %10, %120 : vector<8x128xf32>
    %122 = arith.addf %118, %121 : vector<8x128xf32>
    %c19 = arith.constant 19 : index
    %123 = memref.load %arg1[%c19] : memref<80xf32, #tpu.memory_space<smem>>
    %124 = vector.broadcast %123 : f32 to vector<8x128xf32>
    %125 = arith.mulf %13, %124 : vector<8x128xf32>
    %126 = arith.addf %122, %125 : vector<8x128xf32>
    %cst_20 = arith.constant 0.000000e+00 : f32
    %127 = vector.broadcast %cst_20 : f32 to vector<8x128xf32>
    %128 = arith.maximumf %126, %127 : vector<8x128xf32>
    %c4_21 = arith.constant 4 : index
    %129 = memref.load %arg3[%c4_21] : memref<20xf32, #tpu.memory_space<smem>>
    %130 = vector.broadcast %129 : f32 to vector<8x128xf32>
    %131 = arith.mulf %128, %130 : vector<8x128xf32>
    %132 = arith.addf %108, %131 : vector<8x128xf32>
    %c20 = arith.constant 20 : index
    %133 = memref.load %arg1[%c20] : memref<80xf32, #tpu.memory_space<smem>>
    %134 = vector.broadcast %133 : f32 to vector<8x128xf32>
    %135 = arith.mulf %4, %134 : vector<8x128xf32>
    %c5_22 = arith.constant 5 : index
    %136 = memref.load %arg2[%c5_22] : memref<20xf32, #tpu.memory_space<smem>>
    %137 = vector.broadcast %136 : f32 to vector<8x128xf32>
    %138 = arith.addf %135, %137 : vector<8x128xf32>
    %c21 = arith.constant 21 : index
    %139 = memref.load %arg1[%c21] : memref<80xf32, #tpu.memory_space<smem>>
    %140 = vector.broadcast %139 : f32 to vector<8x128xf32>
    %141 = arith.mulf %7, %140 : vector<8x128xf32>
    %142 = arith.addf %138, %141 : vector<8x128xf32>
    %c22 = arith.constant 22 : index
    %143 = memref.load %arg1[%c22] : memref<80xf32, #tpu.memory_space<smem>>
    %144 = vector.broadcast %143 : f32 to vector<8x128xf32>
    %145 = arith.mulf %10, %144 : vector<8x128xf32>
    %146 = arith.addf %142, %145 : vector<8x128xf32>
    %c23 = arith.constant 23 : index
    %147 = memref.load %arg1[%c23] : memref<80xf32, #tpu.memory_space<smem>>
    %148 = vector.broadcast %147 : f32 to vector<8x128xf32>
    %149 = arith.mulf %13, %148 : vector<8x128xf32>
    %150 = arith.addf %146, %149 : vector<8x128xf32>
    %cst_23 = arith.constant 0.000000e+00 : f32
    %151 = vector.broadcast %cst_23 : f32 to vector<8x128xf32>
    %152 = arith.maximumf %150, %151 : vector<8x128xf32>
    %c5_24 = arith.constant 5 : index
    %153 = memref.load %arg3[%c5_24] : memref<20xf32, #tpu.memory_space<smem>>
    %154 = vector.broadcast %153 : f32 to vector<8x128xf32>
    %155 = arith.mulf %152, %154 : vector<8x128xf32>
    %156 = arith.addf %132, %155 : vector<8x128xf32>
    %c24 = arith.constant 24 : index
    %157 = memref.load %arg1[%c24] : memref<80xf32, #tpu.memory_space<smem>>
    %158 = vector.broadcast %157 : f32 to vector<8x128xf32>
    %159 = arith.mulf %4, %158 : vector<8x128xf32>
    %c6_25 = arith.constant 6 : index
    %160 = memref.load %arg2[%c6_25] : memref<20xf32, #tpu.memory_space<smem>>
    %161 = vector.broadcast %160 : f32 to vector<8x128xf32>
    %162 = arith.addf %159, %161 : vector<8x128xf32>
    %c25 = arith.constant 25 : index
    %163 = memref.load %arg1[%c25] : memref<80xf32, #tpu.memory_space<smem>>
    %164 = vector.broadcast %163 : f32 to vector<8x128xf32>
    %165 = arith.mulf %7, %164 : vector<8x128xf32>
    %166 = arith.addf %162, %165 : vector<8x128xf32>
    %c26 = arith.constant 26 : index
    %167 = memref.load %arg1[%c26] : memref<80xf32, #tpu.memory_space<smem>>
    %168 = vector.broadcast %167 : f32 to vector<8x128xf32>
    %169 = arith.mulf %10, %168 : vector<8x128xf32>
    %170 = arith.addf %166, %169 : vector<8x128xf32>
    %c27 = arith.constant 27 : index
    %171 = memref.load %arg1[%c27] : memref<80xf32, #tpu.memory_space<smem>>
    %172 = vector.broadcast %171 : f32 to vector<8x128xf32>
    %173 = arith.mulf %13, %172 : vector<8x128xf32>
    %174 = arith.addf %170, %173 : vector<8x128xf32>
    %cst_26 = arith.constant 0.000000e+00 : f32
    %175 = vector.broadcast %cst_26 : f32 to vector<8x128xf32>
    %176 = arith.maximumf %174, %175 : vector<8x128xf32>
    %c6_27 = arith.constant 6 : index
    %177 = memref.load %arg3[%c6_27] : memref<20xf32, #tpu.memory_space<smem>>
    %178 = vector.broadcast %177 : f32 to vector<8x128xf32>
    %179 = arith.mulf %176, %178 : vector<8x128xf32>
    %180 = arith.addf %156, %179 : vector<8x128xf32>
    %c28 = arith.constant 28 : index
    %181 = memref.load %arg1[%c28] : memref<80xf32, #tpu.memory_space<smem>>
    %182 = vector.broadcast %181 : f32 to vector<8x128xf32>
    %183 = arith.mulf %4, %182 : vector<8x128xf32>
    %c7_28 = arith.constant 7 : index
    %184 = memref.load %arg2[%c7_28] : memref<20xf32, #tpu.memory_space<smem>>
    %185 = vector.broadcast %184 : f32 to vector<8x128xf32>
    %186 = arith.addf %183, %185 : vector<8x128xf32>
    %c29 = arith.constant 29 : index
    %187 = memref.load %arg1[%c29] : memref<80xf32, #tpu.memory_space<smem>>
    %188 = vector.broadcast %187 : f32 to vector<8x128xf32>
    %189 = arith.mulf %7, %188 : vector<8x128xf32>
    %190 = arith.addf %186, %189 : vector<8x128xf32>
    %c30 = arith.constant 30 : index
    %191 = memref.load %arg1[%c30] : memref<80xf32, #tpu.memory_space<smem>>
    %192 = vector.broadcast %191 : f32 to vector<8x128xf32>
    %193 = arith.mulf %10, %192 : vector<8x128xf32>
    %194 = arith.addf %190, %193 : vector<8x128xf32>
    %c31 = arith.constant 31 : index
    %195 = memref.load %arg1[%c31] : memref<80xf32, #tpu.memory_space<smem>>
    %196 = vector.broadcast %195 : f32 to vector<8x128xf32>
    %197 = arith.mulf %13, %196 : vector<8x128xf32>
    %198 = arith.addf %194, %197 : vector<8x128xf32>
    %cst_29 = arith.constant 0.000000e+00 : f32
    %199 = vector.broadcast %cst_29 : f32 to vector<8x128xf32>
    %200 = arith.maximumf %198, %199 : vector<8x128xf32>
    %c7_30 = arith.constant 7 : index
    %201 = memref.load %arg3[%c7_30] : memref<20xf32, #tpu.memory_space<smem>>
    %202 = vector.broadcast %201 : f32 to vector<8x128xf32>
    %203 = arith.mulf %200, %202 : vector<8x128xf32>
    %204 = arith.addf %180, %203 : vector<8x128xf32>
    %c32 = arith.constant 32 : index
    %205 = memref.load %arg1[%c32] : memref<80xf32, #tpu.memory_space<smem>>
    %206 = vector.broadcast %205 : f32 to vector<8x128xf32>
    %207 = arith.mulf %4, %206 : vector<8x128xf32>
    %c8_31 = arith.constant 8 : index
    %208 = memref.load %arg2[%c8_31] : memref<20xf32, #tpu.memory_space<smem>>
    %209 = vector.broadcast %208 : f32 to vector<8x128xf32>
    %210 = arith.addf %207, %209 : vector<8x128xf32>
    %c33 = arith.constant 33 : index
    %211 = memref.load %arg1[%c33] : memref<80xf32, #tpu.memory_space<smem>>
    %212 = vector.broadcast %211 : f32 to vector<8x128xf32>
    %213 = arith.mulf %7, %212 : vector<8x128xf32>
    %214 = arith.addf %210, %213 : vector<8x128xf32>
    %c34 = arith.constant 34 : index
    %215 = memref.load %arg1[%c34] : memref<80xf32, #tpu.memory_space<smem>>
    %216 = vector.broadcast %215 : f32 to vector<8x128xf32>
    %217 = arith.mulf %10, %216 : vector<8x128xf32>
    %218 = arith.addf %214, %217 : vector<8x128xf32>
    %c35 = arith.constant 35 : index
    %219 = memref.load %arg1[%c35] : memref<80xf32, #tpu.memory_space<smem>>
    %220 = vector.broadcast %219 : f32 to vector<8x128xf32>
    %221 = arith.mulf %13, %220 : vector<8x128xf32>
    %222 = arith.addf %218, %221 : vector<8x128xf32>
    %cst_32 = arith.constant 0.000000e+00 : f32
    %223 = vector.broadcast %cst_32 : f32 to vector<8x128xf32>
    %224 = arith.maximumf %222, %223 : vector<8x128xf32>
    %c8_33 = arith.constant 8 : index
    %225 = memref.load %arg3[%c8_33] : memref<20xf32, #tpu.memory_space<smem>>
    %226 = vector.broadcast %225 : f32 to vector<8x128xf32>
    %227 = arith.mulf %224, %226 : vector<8x128xf32>
    %228 = arith.addf %204, %227 : vector<8x128xf32>
    %c36 = arith.constant 36 : index
    %229 = memref.load %arg1[%c36] : memref<80xf32, #tpu.memory_space<smem>>
    %230 = vector.broadcast %229 : f32 to vector<8x128xf32>
    %231 = arith.mulf %4, %230 : vector<8x128xf32>
    %c9_34 = arith.constant 9 : index
    %232 = memref.load %arg2[%c9_34] : memref<20xf32, #tpu.memory_space<smem>>
    %233 = vector.broadcast %232 : f32 to vector<8x128xf32>
    %234 = arith.addf %231, %233 : vector<8x128xf32>
    %c37 = arith.constant 37 : index
    %235 = memref.load %arg1[%c37] : memref<80xf32, #tpu.memory_space<smem>>
    %236 = vector.broadcast %235 : f32 to vector<8x128xf32>
    %237 = arith.mulf %7, %236 : vector<8x128xf32>
    %238 = arith.addf %234, %237 : vector<8x128xf32>
    %c38 = arith.constant 38 : index
    %239 = memref.load %arg1[%c38] : memref<80xf32, #tpu.memory_space<smem>>
    %240 = vector.broadcast %239 : f32 to vector<8x128xf32>
    %241 = arith.mulf %10, %240 : vector<8x128xf32>
    %242 = arith.addf %238, %241 : vector<8x128xf32>
    %c39 = arith.constant 39 : index
    %243 = memref.load %arg1[%c39] : memref<80xf32, #tpu.memory_space<smem>>
    %244 = vector.broadcast %243 : f32 to vector<8x128xf32>
    %245 = arith.mulf %13, %244 : vector<8x128xf32>
    %246 = arith.addf %242, %245 : vector<8x128xf32>
    %cst_35 = arith.constant 0.000000e+00 : f32
    %247 = vector.broadcast %cst_35 : f32 to vector<8x128xf32>
    %248 = arith.maximumf %246, %247 : vector<8x128xf32>
    %c9_36 = arith.constant 9 : index
    %249 = memref.load %arg3[%c9_36] : memref<20xf32, #tpu.memory_space<smem>>
    %250 = vector.broadcast %249 : f32 to vector<8x128xf32>
    %251 = arith.mulf %248, %250 : vector<8x128xf32>
    %252 = arith.addf %228, %251 : vector<8x128xf32>
    %c40 = arith.constant 40 : index
    %253 = memref.load %arg1[%c40] : memref<80xf32, #tpu.memory_space<smem>>
    %254 = vector.broadcast %253 : f32 to vector<8x128xf32>
    %255 = arith.mulf %4, %254 : vector<8x128xf32>
    %c10_37 = arith.constant 10 : index
    %256 = memref.load %arg2[%c10_37] : memref<20xf32, #tpu.memory_space<smem>>
    %257 = vector.broadcast %256 : f32 to vector<8x128xf32>
    %258 = arith.addf %255, %257 : vector<8x128xf32>
    %c41 = arith.constant 41 : index
    %259 = memref.load %arg1[%c41] : memref<80xf32, #tpu.memory_space<smem>>
    %260 = vector.broadcast %259 : f32 to vector<8x128xf32>
    %261 = arith.mulf %7, %260 : vector<8x128xf32>
    %262 = arith.addf %258, %261 : vector<8x128xf32>
    %c42 = arith.constant 42 : index
    %263 = memref.load %arg1[%c42] : memref<80xf32, #tpu.memory_space<smem>>
    %264 = vector.broadcast %263 : f32 to vector<8x128xf32>
    %265 = arith.mulf %10, %264 : vector<8x128xf32>
    %266 = arith.addf %262, %265 : vector<8x128xf32>
    %c43 = arith.constant 43 : index
    %267 = memref.load %arg1[%c43] : memref<80xf32, #tpu.memory_space<smem>>
    %268 = vector.broadcast %267 : f32 to vector<8x128xf32>
    %269 = arith.mulf %13, %268 : vector<8x128xf32>
    %270 = arith.addf %266, %269 : vector<8x128xf32>
    %cst_38 = arith.constant 0.000000e+00 : f32
    %271 = vector.broadcast %cst_38 : f32 to vector<8x128xf32>
    %272 = arith.maximumf %270, %271 : vector<8x128xf32>
    %c10_39 = arith.constant 10 : index
    %273 = memref.load %arg3[%c10_39] : memref<20xf32, #tpu.memory_space<smem>>
    %274 = vector.broadcast %273 : f32 to vector<8x128xf32>
    %275 = arith.mulf %272, %274 : vector<8x128xf32>
    %276 = arith.addf %252, %275 : vector<8x128xf32>
    %c44 = arith.constant 44 : index
    %277 = memref.load %arg1[%c44] : memref<80xf32, #tpu.memory_space<smem>>
    %278 = vector.broadcast %277 : f32 to vector<8x128xf32>
    %279 = arith.mulf %4, %278 : vector<8x128xf32>
    %c11_40 = arith.constant 11 : index
    %280 = memref.load %arg2[%c11_40] : memref<20xf32, #tpu.memory_space<smem>>
    %281 = vector.broadcast %280 : f32 to vector<8x128xf32>
    %282 = arith.addf %279, %281 : vector<8x128xf32>
    %c45 = arith.constant 45 : index
    %283 = memref.load %arg1[%c45] : memref<80xf32, #tpu.memory_space<smem>>
    %284 = vector.broadcast %283 : f32 to vector<8x128xf32>
    %285 = arith.mulf %7, %284 : vector<8x128xf32>
    %286 = arith.addf %282, %285 : vector<8x128xf32>
    %c46 = arith.constant 46 : index
    %287 = memref.load %arg1[%c46] : memref<80xf32, #tpu.memory_space<smem>>
    %288 = vector.broadcast %287 : f32 to vector<8x128xf32>
    %289 = arith.mulf %10, %288 : vector<8x128xf32>
    %290 = arith.addf %286, %289 : vector<8x128xf32>
    %c47 = arith.constant 47 : index
    %291 = memref.load %arg1[%c47] : memref<80xf32, #tpu.memory_space<smem>>
    %292 = vector.broadcast %291 : f32 to vector<8x128xf32>
    %293 = arith.mulf %13, %292 : vector<8x128xf32>
    %294 = arith.addf %290, %293 : vector<8x128xf32>
    %cst_41 = arith.constant 0.000000e+00 : f32
    %295 = vector.broadcast %cst_41 : f32 to vector<8x128xf32>
    %296 = arith.maximumf %294, %295 : vector<8x128xf32>
    %c11_42 = arith.constant 11 : index
    %297 = memref.load %arg3[%c11_42] : memref<20xf32, #tpu.memory_space<smem>>
    %298 = vector.broadcast %297 : f32 to vector<8x128xf32>
    %299 = arith.mulf %296, %298 : vector<8x128xf32>
    %300 = arith.addf %276, %299 : vector<8x128xf32>
    %c48 = arith.constant 48 : index
    %301 = memref.load %arg1[%c48] : memref<80xf32, #tpu.memory_space<smem>>
    %302 = vector.broadcast %301 : f32 to vector<8x128xf32>
    %303 = arith.mulf %4, %302 : vector<8x128xf32>
    %c12_43 = arith.constant 12 : index
    %304 = memref.load %arg2[%c12_43] : memref<20xf32, #tpu.memory_space<smem>>
    %305 = vector.broadcast %304 : f32 to vector<8x128xf32>
    %306 = arith.addf %303, %305 : vector<8x128xf32>
    %c49 = arith.constant 49 : index
    %307 = memref.load %arg1[%c49] : memref<80xf32, #tpu.memory_space<smem>>
    %308 = vector.broadcast %307 : f32 to vector<8x128xf32>
    %309 = arith.mulf %7, %308 : vector<8x128xf32>
    %310 = arith.addf %306, %309 : vector<8x128xf32>
    %c50 = arith.constant 50 : index
    %311 = memref.load %arg1[%c50] : memref<80xf32, #tpu.memory_space<smem>>
    %312 = vector.broadcast %311 : f32 to vector<8x128xf32>
    %313 = arith.mulf %10, %312 : vector<8x128xf32>
    %314 = arith.addf %310, %313 : vector<8x128xf32>
    %c51 = arith.constant 51 : index
    %315 = memref.load %arg1[%c51] : memref<80xf32, #tpu.memory_space<smem>>
    %316 = vector.broadcast %315 : f32 to vector<8x128xf32>
    %317 = arith.mulf %13, %316 : vector<8x128xf32>
    %318 = arith.addf %314, %317 : vector<8x128xf32>
    %cst_44 = arith.constant 0.000000e+00 : f32
    %319 = vector.broadcast %cst_44 : f32 to vector<8x128xf32>
    %320 = arith.maximumf %318, %319 : vector<8x128xf32>
    %c12_45 = arith.constant 12 : index
    %321 = memref.load %arg3[%c12_45] : memref<20xf32, #tpu.memory_space<smem>>
    %322 = vector.broadcast %321 : f32 to vector<8x128xf32>
    %323 = arith.mulf %320, %322 : vector<8x128xf32>
    %324 = arith.addf %300, %323 : vector<8x128xf32>
    %c52 = arith.constant 52 : index
    %325 = memref.load %arg1[%c52] : memref<80xf32, #tpu.memory_space<smem>>
    %326 = vector.broadcast %325 : f32 to vector<8x128xf32>
    %327 = arith.mulf %4, %326 : vector<8x128xf32>
    %c13_46 = arith.constant 13 : index
    %328 = memref.load %arg2[%c13_46] : memref<20xf32, #tpu.memory_space<smem>>
    %329 = vector.broadcast %328 : f32 to vector<8x128xf32>
    %330 = arith.addf %327, %329 : vector<8x128xf32>
    %c53 = arith.constant 53 : index
    %331 = memref.load %arg1[%c53] : memref<80xf32, #tpu.memory_space<smem>>
    %332 = vector.broadcast %331 : f32 to vector<8x128xf32>
    %333 = arith.mulf %7, %332 : vector<8x128xf32>
    %334 = arith.addf %330, %333 : vector<8x128xf32>
    %c54 = arith.constant 54 : index
    %335 = memref.load %arg1[%c54] : memref<80xf32, #tpu.memory_space<smem>>
    %336 = vector.broadcast %335 : f32 to vector<8x128xf32>
    %337 = arith.mulf %10, %336 : vector<8x128xf32>
    %338 = arith.addf %334, %337 : vector<8x128xf32>
    %c55 = arith.constant 55 : index
    %339 = memref.load %arg1[%c55] : memref<80xf32, #tpu.memory_space<smem>>
    %340 = vector.broadcast %339 : f32 to vector<8x128xf32>
    %341 = arith.mulf %13, %340 : vector<8x128xf32>
    %342 = arith.addf %338, %341 : vector<8x128xf32>
    %cst_47 = arith.constant 0.000000e+00 : f32
    %343 = vector.broadcast %cst_47 : f32 to vector<8x128xf32>
    %344 = arith.maximumf %342, %343 : vector<8x128xf32>
    %c13_48 = arith.constant 13 : index
    %345 = memref.load %arg3[%c13_48] : memref<20xf32, #tpu.memory_space<smem>>
    %346 = vector.broadcast %345 : f32 to vector<8x128xf32>
    %347 = arith.mulf %344, %346 : vector<8x128xf32>
    %348 = arith.addf %324, %347 : vector<8x128xf32>
    %c56 = arith.constant 56 : index
    %349 = memref.load %arg1[%c56] : memref<80xf32, #tpu.memory_space<smem>>
    %350 = vector.broadcast %349 : f32 to vector<8x128xf32>
    %351 = arith.mulf %4, %350 : vector<8x128xf32>
    %c14_49 = arith.constant 14 : index
    %352 = memref.load %arg2[%c14_49] : memref<20xf32, #tpu.memory_space<smem>>
    %353 = vector.broadcast %352 : f32 to vector<8x128xf32>
    %354 = arith.addf %351, %353 : vector<8x128xf32>
    %c57 = arith.constant 57 : index
    %355 = memref.load %arg1[%c57] : memref<80xf32, #tpu.memory_space<smem>>
    %356 = vector.broadcast %355 : f32 to vector<8x128xf32>
    %357 = arith.mulf %7, %356 : vector<8x128xf32>
    %358 = arith.addf %354, %357 : vector<8x128xf32>
    %c58 = arith.constant 58 : index
    %359 = memref.load %arg1[%c58] : memref<80xf32, #tpu.memory_space<smem>>
    %360 = vector.broadcast %359 : f32 to vector<8x128xf32>
    %361 = arith.mulf %10, %360 : vector<8x128xf32>
    %362 = arith.addf %358, %361 : vector<8x128xf32>
    %c59 = arith.constant 59 : index
    %363 = memref.load %arg1[%c59] : memref<80xf32, #tpu.memory_space<smem>>
    %364 = vector.broadcast %363 : f32 to vector<8x128xf32>
    %365 = arith.mulf %13, %364 : vector<8x128xf32>
    %366 = arith.addf %362, %365 : vector<8x128xf32>
    %cst_50 = arith.constant 0.000000e+00 : f32
    %367 = vector.broadcast %cst_50 : f32 to vector<8x128xf32>
    %368 = arith.maximumf %366, %367 : vector<8x128xf32>
    %c14_51 = arith.constant 14 : index
    %369 = memref.load %arg3[%c14_51] : memref<20xf32, #tpu.memory_space<smem>>
    %370 = vector.broadcast %369 : f32 to vector<8x128xf32>
    %371 = arith.mulf %368, %370 : vector<8x128xf32>
    %372 = arith.addf %348, %371 : vector<8x128xf32>
    %c60 = arith.constant 60 : index
    %373 = memref.load %arg1[%c60] : memref<80xf32, #tpu.memory_space<smem>>
    %374 = vector.broadcast %373 : f32 to vector<8x128xf32>
    %375 = arith.mulf %4, %374 : vector<8x128xf32>
    %c15_52 = arith.constant 15 : index
    %376 = memref.load %arg2[%c15_52] : memref<20xf32, #tpu.memory_space<smem>>
    %377 = vector.broadcast %376 : f32 to vector<8x128xf32>
    %378 = arith.addf %375, %377 : vector<8x128xf32>
    %c61 = arith.constant 61 : index
    %379 = memref.load %arg1[%c61] : memref<80xf32, #tpu.memory_space<smem>>
    %380 = vector.broadcast %379 : f32 to vector<8x128xf32>
    %381 = arith.mulf %7, %380 : vector<8x128xf32>
    %382 = arith.addf %378, %381 : vector<8x128xf32>
    %c62 = arith.constant 62 : index
    %383 = memref.load %arg1[%c62] : memref<80xf32, #tpu.memory_space<smem>>
    %384 = vector.broadcast %383 : f32 to vector<8x128xf32>
    %385 = arith.mulf %10, %384 : vector<8x128xf32>
    %386 = arith.addf %382, %385 : vector<8x128xf32>
    %c63 = arith.constant 63 : index
    %387 = memref.load %arg1[%c63] : memref<80xf32, #tpu.memory_space<smem>>
    %388 = vector.broadcast %387 : f32 to vector<8x128xf32>
    %389 = arith.mulf %13, %388 : vector<8x128xf32>
    %390 = arith.addf %386, %389 : vector<8x128xf32>
    %cst_53 = arith.constant 0.000000e+00 : f32
    %391 = vector.broadcast %cst_53 : f32 to vector<8x128xf32>
    %392 = arith.maximumf %390, %391 : vector<8x128xf32>
    %c15_54 = arith.constant 15 : index
    %393 = memref.load %arg3[%c15_54] : memref<20xf32, #tpu.memory_space<smem>>
    %394 = vector.broadcast %393 : f32 to vector<8x128xf32>
    %395 = arith.mulf %392, %394 : vector<8x128xf32>
    %396 = arith.addf %372, %395 : vector<8x128xf32>
    %c64 = arith.constant 64 : index
    %397 = memref.load %arg1[%c64] : memref<80xf32, #tpu.memory_space<smem>>
    %398 = vector.broadcast %397 : f32 to vector<8x128xf32>
    %399 = arith.mulf %4, %398 : vector<8x128xf32>
    %c16_55 = arith.constant 16 : index
    %400 = memref.load %arg2[%c16_55] : memref<20xf32, #tpu.memory_space<smem>>
    %401 = vector.broadcast %400 : f32 to vector<8x128xf32>
    %402 = arith.addf %399, %401 : vector<8x128xf32>
    %c65 = arith.constant 65 : index
    %403 = memref.load %arg1[%c65] : memref<80xf32, #tpu.memory_space<smem>>
    %404 = vector.broadcast %403 : f32 to vector<8x128xf32>
    %405 = arith.mulf %7, %404 : vector<8x128xf32>
    %406 = arith.addf %402, %405 : vector<8x128xf32>
    %c66 = arith.constant 66 : index
    %407 = memref.load %arg1[%c66] : memref<80xf32, #tpu.memory_space<smem>>
    %408 = vector.broadcast %407 : f32 to vector<8x128xf32>
    %409 = arith.mulf %10, %408 : vector<8x128xf32>
    %410 = arith.addf %406, %409 : vector<8x128xf32>
    %c67 = arith.constant 67 : index
    %411 = memref.load %arg1[%c67] : memref<80xf32, #tpu.memory_space<smem>>
    %412 = vector.broadcast %411 : f32 to vector<8x128xf32>
    %413 = arith.mulf %13, %412 : vector<8x128xf32>
    %414 = arith.addf %410, %413 : vector<8x128xf32>
    %cst_56 = arith.constant 0.000000e+00 : f32
    %415 = vector.broadcast %cst_56 : f32 to vector<8x128xf32>
    %416 = arith.maximumf %414, %415 : vector<8x128xf32>
    %c16_57 = arith.constant 16 : index
    %417 = memref.load %arg3[%c16_57] : memref<20xf32, #tpu.memory_space<smem>>
    %418 = vector.broadcast %417 : f32 to vector<8x128xf32>
    %419 = arith.mulf %416, %418 : vector<8x128xf32>
    %420 = arith.addf %396, %419 : vector<8x128xf32>
    %c68 = arith.constant 68 : index
    %421 = memref.load %arg1[%c68] : memref<80xf32, #tpu.memory_space<smem>>
    %422 = vector.broadcast %421 : f32 to vector<8x128xf32>
    %423 = arith.mulf %4, %422 : vector<8x128xf32>
    %c17_58 = arith.constant 17 : index
    %424 = memref.load %arg2[%c17_58] : memref<20xf32, #tpu.memory_space<smem>>
    %425 = vector.broadcast %424 : f32 to vector<8x128xf32>
    %426 = arith.addf %423, %425 : vector<8x128xf32>
    %c69 = arith.constant 69 : index
    %427 = memref.load %arg1[%c69] : memref<80xf32, #tpu.memory_space<smem>>
    %428 = vector.broadcast %427 : f32 to vector<8x128xf32>
    %429 = arith.mulf %7, %428 : vector<8x128xf32>
    %430 = arith.addf %426, %429 : vector<8x128xf32>
    %c70 = arith.constant 70 : index
    %431 = memref.load %arg1[%c70] : memref<80xf32, #tpu.memory_space<smem>>
    %432 = vector.broadcast %431 : f32 to vector<8x128xf32>
    %433 = arith.mulf %10, %432 : vector<8x128xf32>
    %434 = arith.addf %430, %433 : vector<8x128xf32>
    %c71 = arith.constant 71 : index
    %435 = memref.load %arg1[%c71] : memref<80xf32, #tpu.memory_space<smem>>
    %436 = vector.broadcast %435 : f32 to vector<8x128xf32>
    %437 = arith.mulf %13, %436 : vector<8x128xf32>
    %438 = arith.addf %434, %437 : vector<8x128xf32>
    %cst_59 = arith.constant 0.000000e+00 : f32
    %439 = vector.broadcast %cst_59 : f32 to vector<8x128xf32>
    %440 = arith.maximumf %438, %439 : vector<8x128xf32>
    %c17_60 = arith.constant 17 : index
    %441 = memref.load %arg3[%c17_60] : memref<20xf32, #tpu.memory_space<smem>>
    %442 = vector.broadcast %441 : f32 to vector<8x128xf32>
    %443 = arith.mulf %440, %442 : vector<8x128xf32>
    %444 = arith.addf %420, %443 : vector<8x128xf32>
    %c72 = arith.constant 72 : index
    %445 = memref.load %arg1[%c72] : memref<80xf32, #tpu.memory_space<smem>>
    %446 = vector.broadcast %445 : f32 to vector<8x128xf32>
    %447 = arith.mulf %4, %446 : vector<8x128xf32>
    %c18_61 = arith.constant 18 : index
    %448 = memref.load %arg2[%c18_61] : memref<20xf32, #tpu.memory_space<smem>>
    %449 = vector.broadcast %448 : f32 to vector<8x128xf32>
    %450 = arith.addf %447, %449 : vector<8x128xf32>
    %c73 = arith.constant 73 : index
    %451 = memref.load %arg1[%c73] : memref<80xf32, #tpu.memory_space<smem>>
    %452 = vector.broadcast %451 : f32 to vector<8x128xf32>
    %453 = arith.mulf %7, %452 : vector<8x128xf32>
    %454 = arith.addf %450, %453 : vector<8x128xf32>
    %c74 = arith.constant 74 : index
    %455 = memref.load %arg1[%c74] : memref<80xf32, #tpu.memory_space<smem>>
    %456 = vector.broadcast %455 : f32 to vector<8x128xf32>
    %457 = arith.mulf %10, %456 : vector<8x128xf32>
    %458 = arith.addf %454, %457 : vector<8x128xf32>
    %c75 = arith.constant 75 : index
    %459 = memref.load %arg1[%c75] : memref<80xf32, #tpu.memory_space<smem>>
    %460 = vector.broadcast %459 : f32 to vector<8x128xf32>
    %461 = arith.mulf %13, %460 : vector<8x128xf32>
    %462 = arith.addf %458, %461 : vector<8x128xf32>
    %cst_62 = arith.constant 0.000000e+00 : f32
    %463 = vector.broadcast %cst_62 : f32 to vector<8x128xf32>
    %464 = arith.maximumf %462, %463 : vector<8x128xf32>
    %c18_63 = arith.constant 18 : index
    %465 = memref.load %arg3[%c18_63] : memref<20xf32, #tpu.memory_space<smem>>
    %466 = vector.broadcast %465 : f32 to vector<8x128xf32>
    %467 = arith.mulf %464, %466 : vector<8x128xf32>
    %468 = arith.addf %444, %467 : vector<8x128xf32>
    %c76 = arith.constant 76 : index
    %469 = memref.load %arg1[%c76] : memref<80xf32, #tpu.memory_space<smem>>
    %470 = vector.broadcast %469 : f32 to vector<8x128xf32>
    %471 = arith.mulf %4, %470 : vector<8x128xf32>
    %c19_64 = arith.constant 19 : index
    %472 = memref.load %arg2[%c19_64] : memref<20xf32, #tpu.memory_space<smem>>
    %473 = vector.broadcast %472 : f32 to vector<8x128xf32>
    %474 = arith.addf %471, %473 : vector<8x128xf32>
    %c77 = arith.constant 77 : index
    %475 = memref.load %arg1[%c77] : memref<80xf32, #tpu.memory_space<smem>>
    %476 = vector.broadcast %475 : f32 to vector<8x128xf32>
    %477 = arith.mulf %7, %476 : vector<8x128xf32>
    %478 = arith.addf %474, %477 : vector<8x128xf32>
    %c78 = arith.constant 78 : index
    %479 = memref.load %arg1[%c78] : memref<80xf32, #tpu.memory_space<smem>>
    %480 = vector.broadcast %479 : f32 to vector<8x128xf32>
    %481 = arith.mulf %10, %480 : vector<8x128xf32>
    %482 = arith.addf %478, %481 : vector<8x128xf32>
    %c79 = arith.constant 79 : index
    %483 = memref.load %arg1[%c79] : memref<80xf32, #tpu.memory_space<smem>>
    %484 = vector.broadcast %483 : f32 to vector<8x128xf32>
    %485 = arith.mulf %13, %484 : vector<8x128xf32>
    %486 = arith.addf %482, %485 : vector<8x128xf32>
    %cst_65 = arith.constant 0.000000e+00 : f32
    %487 = vector.broadcast %cst_65 : f32 to vector<8x128xf32>
    %488 = arith.maximumf %486, %487 : vector<8x128xf32>
    %c19_66 = arith.constant 19 : index
    %489 = memref.load %arg3[%c19_66] : memref<20xf32, #tpu.memory_space<smem>>
    %490 = vector.broadcast %489 : f32 to vector<8x128xf32>
    %491 = arith.mulf %488, %490 : vector<8x128xf32>
    %492 = arith.addf %468, %491 : vector<8x128xf32>
    %c0_67 = arith.constant 0 : index
    %493 = memref.load %arg4[%c0_67] : memref<1xf32, #tpu.memory_space<smem>>
    %494 = vector.broadcast %493 : f32 to vector<8x128xf32>
    %495 = arith.addf %492, %494 : vector<8x128xf32>
    %cst_68 = arith.constant 0.000000e+00 : f32
    %496 = vector.broadcast %cst_68 : f32 to vector<8x128xf32>
    %497 = arith.maximumf %495, %496 : vector<8x128xf32>
    %498 = arith.index_cast %1 : i32 to index
    %c0_69 = arith.constant 0 : index
    %499 = vector.load %arg6[%498, %c0_69] : memref<8x128xf32, #tpu.memory_space<vmem>>, vector<8x128xf32>
    tpu.vector_store %arg6[%498, %c0_69], %497 {strides = array<i32>} : memref<8x128xf32, #tpu.memory_space<vmem>>, vector<8x128xf32>,
    %c1_i32 = arith.constant 1 : i32
    return
  }
  func.func @transform_0(%arg0: i32) -> i32 {
    %c0_i32 = arith.constant 0 : i32
    %c0_i32_0 = arith.constant 0 : i32
    return %c0_i32 : i32
  }
  func.func @transform_1(%arg0: i32) -> i32 {
    %c0_i32 = arith.constant 0 : i32
    %c0_i32_0 = arith.constant 0 : i32
    return %c0_i32 : i32
  }
  func.func @transform_2(%arg0: i32) -> i32 {
    %c0_i32 = arith.constant 0 : i32
    %c0_i32_0 = arith.constant 0 : i32
    return %c0_i32 : i32
  }
  func.func @transform_3(%arg0: i32) -> i32 {
    %c0_i32 = arith.constant 0 : i32
    %c0_i32_0 = arith.constant 0 : i32
    return %c0_i32 : i32
  }
  func.func @transform_4(%arg0: i32) -> (i32, i32, i32) {
    %c0_i32 = arith.constant 0 : i32
    %c0_i32_0 = arith.constant 0 : i32
    %c0_i32_1 = arith.constant 0 : i32
    return %c0_i32, %arg0, %c0_i32_0 : i32, i32, i32
  }
  func.func @transform_5(%arg0: i32) -> (i32, i32) {
    %c0_i32 = arith.constant 0 : i32
    %c0_i32_0 = arith.constant 0 : i32
    return %arg0, %c0_i32 : i32, i32
  }
}

</mosaic_0001>

<llo_original>
// kernel: baseline_value_forward.1
$region0: #{baseline_value_forward.1}
  #allocation0 [shape = 'u32[]', space=smem, size = 0x4, offset = 0x4, fixed_abs, tag = 'smem constant byte address 0x4 - core index']
  #allocation1 [shape = 'u32[144,128]{1,0:T(1,128)}', space=vmem, size = 0x12000, scoped, tag = 'internal scratch']
  #allocation2 [shape = 'f32[1]{0:T(128)S(6)}', space=smem, size = 0x200, scoped, tag = 'scoped memory for baseline_value_forward.1']
  %s0 = inlined_call_operand.vmem [shape: f32[80], index: 0, kind: input, shape index: {}]
  %s1 = inlined_call_operand.vmem [shape: f32[20], index: 1, kind: input, shape index: {}]
  %s2 = inlined_call_operand.vmem [shape: f32[20], index: 2, kind: input, shape index: {}]
  %s3 = inlined_call_operand.<no memory space> [shape: f32[1], index: 3, kind: input, shape index: {}]
  %s4 = inlined_call_operand.vmem [shape: f32[4,8,128], index: 4, kind: input, shape index: {}]
  %s5 = inlined_call_operand.vmem [shape: f32[8,128], index: 5, kind: output, shape index: {}]
  %s6 = sld [smem:[#allocation0]]
  $region42: #{baseline_value_forward.1} parent=0
    _
  %s8 = ssub.s32 1, %s6
  %s9 = scalar_select 0, %s8, %s6
  %10 = sst [smem:[#allocation2]] %s3
  $region1: #{baseline_value_forward.1} parent=0
    #allocation3 [shape = 'u8[512]{0}', space=smem, size = 0x200, scoped, tag = 'input window, operand 0, single buffered']
    #allocation4 [shape = 's32[1]{0}', space=sflag, size = 0x4, scoped, tag = 'scoped memory for baseline_value_forward.1']
    #allocation5 [shape = 'u8[512]{0}', space=smem, size = 0x200, scoped, tag = 'input window, operand 1, single buffered']
    #allocation6 [shape = 's32[1]{0}', space=sflag, size = 0x4, scoped, tag = 'scoped memory for baseline_value_forward.1']
    #allocation7 [shape = 'u8[512]{0}', space=smem, size = 0x200, scoped, tag = 'input window, operand 2, single buffered']
    %11 = vsyncpa [#allocation4], 0
    %12 = vsyncpa [#allocation6], 0
    // Predicated region
    $region2: #{baseline_value_forward.1} parent=1 // pred_check
      _
    $region3: #{baseline_value_forward.1} parent=1 // pred_check_branch
      %14 = sbr.rel (0) target = $region5
    $region4: #{baseline_value_forward.1} parent=1 // pred_region
      %s16 = ssub.s32 16, 16
      %17 = vsyncadd [#allocation4], %s16
      %s19 = sshll.u32 %s0, 4
      %s20 = int_to_ptr.vmem [resolvable:$true] %s19
      %22 = dma.vmem_to_smem %s20, 16, [#allocation3], [#allocation4]
    $region5: #{baseline_value_forward.1} parent=1 // pred_fallthru
      _
    // Predicated region
    $region6: #{baseline_value_forward.1} parent=1 // pred_check
      _
    $region7: #{baseline_value_forward.1} parent=1 // pred_check_branch
      %24 = sbr.rel (0) target = $region9
    $region8: #{baseline_value_forward.1} parent=1 // pred_region
      %s26 = ssub.s32 16, 16
      %27 = vsyncadd [#allocation6], %s26
      %s29 = sshll.u32 %s1, 4
      %s30 = int_to_ptr.vmem [resolvable:$true] %s29
      %32 = dma.vmem_to_smem %s30, 16, [#allocation5], [#allocation6]
    $region9: #{baseline_value_forward.1} parent=1 // pred_fallthru
      _
    // Predicated region
    $region10: #{baseline_value_forward.1} parent=1 // pred_check
      _
    $region11: #{baseline_value_forward.1} parent=1 // pred_check_branch
      %34 = sbr.rel (0) target = $region13
    $region12: #{baseline_value_forward.1} parent=1 // pred_region
      %s36 = ssub.s32 16, 16
      %37 = vsyncadd [#allocation6], %s36
      %s39 = sshll.u32 %s2, 4
      %s40 = int_to_ptr.vmem [resolvable:$true] %s39
      %42 = dma.vmem_to_smem %s40, 16, [#allocation7], [#allocation6]
    $region13: #{baseline_value_forward.1} parent=1 // pred_fallthru
      _
    // Predicated region
    $region14: #{baseline_value_forward.1} parent=1 // pred_check
      _
    $region15: #{baseline_value_forward.1} parent=1 // pred_check_branch
      %44 = sbr.rel (0) target = $region17
    $region16: #{baseline_value_forward.1} parent=1 // pred_region
      _
    $region17: #{baseline_value_forward.1} parent=1 // pred_fallthru
      _
    // Predicated region
    $region18: #{baseline_value_forward.1} parent=1 // pred_check
      _
    $region19: #{baseline_value_forward.1} parent=1 // pred_check_branch
      %46 = sbr.rel (0) target = $region21
    $region20: #{baseline_value_forward.1} parent=1 // pred_region
      _
    $region21: #{baseline_value_forward.1} parent=1 // pred_fallthru
      _
    // Predicated region
    $region22: #{baseline_value_forward.1} parent=1 // pred_check
      _
    $region23: #{baseline_value_forward.1} parent=1 // pred_check_branch
      %48 = sbr.rel (0) target = $region25
    $region24: #{baseline_value_forward.1} parent=1 // pred_region
      %49 = dma.done [#allocation4], 16
    $region25: #{baseline_value_forward.1} parent=1 // pred_fallthru
      _
    // Predicated region
    $region26: #{baseline_value_forward.1} parent=1 // pred_check
      _
    $region27: #{baseline_value_forward.1} parent=1 // pred_check_branch
      %51 = sbr.rel (0) target = $region29
    $region28: #{baseline_value_forward.1} parent=1 // pred_region
      %52 = dma.done [#allocation6], 16
    $region29: #{baseline_value_forward.1} parent=1 // pred_fallthru
      _
    // Predicated region
    $region30: #{baseline_value_forward.1} parent=1 // pred_check
      _
    $region31: #{baseline_value_forward.1} parent=1 // pred_check_branch
      %54 = sbr.rel (0) target = $region33
    $region32: #{baseline_value_forward.1} parent=1 // pred_region
      %55 = dma.done [#allocation6], 16
    $region33: #{baseline_value_forward.1} parent=1 // pred_fallthru
      _
    %56 = sfence
    %v57 = vld [vmem:[%s4] sm:$0xff]
    %s58 = sadd.s32 0, 8
    %s59 = scalar_lea.vmem %s4, %s58
    %v60 = vld [vmem:[%s59] sm:$0xff]
    %s61 = sadd.s32 0, 16
    %s62 = scalar_lea.vmem %s4, %s61
    %v63 = vld [vmem:[%s62] sm:$0xff]
    %s64 = sadd.s32 0, 24
    %s65 = scalar_lea.vmem %s4, %s64
    %v66 = vld [vmem:[%s65] sm:$0xff]
    %s67 = sld [smem:[#allocation3]]
    %v68 = vstv %s67
    %v69 = vmul.f32 %v57, %v68
    %s70 = sld [smem:[#allocation5]]
    %v71 = vstv %s70
    %v72 = vadd.f32 %v69, %v71
    %s73 = sld [smem:[#allocation3 + $0x1]]
    %v74 = vstv %s73
    %v75 = vmul.f32 %v60, %v74
    %v76 = vadd.f32 %v72, %v75
    %s77 = sld [smem:[#allocation3 + $0x2]]
    %v78 = vstv %s77
    %v79 = vmul.f32 %v63, %v78
    %v80 = vadd.f32 %v76, %v79
    %s81 = sld [smem:[#allocation3 + $0x3]]
    %v82 = vstv %s81
    %v83 = vmul.f32 %v66, %v82
    %v84 = vadd.f32 %v80, %v83
    %v85 = vmax.f32 %v84, 0.0
    %s86 = sld [smem:[#allocation7]]
    %v87 = vstv %s86
    %v88 = vmul.f32 %v85, %v87
    %s89 = sld [smem:[#allocation3 + $0x4]]
    %v90 = vstv %s89
    %v91 = vmul.f32 %v57, %v90
    %s92 = sld [smem:[#allocation5 + $0x1]]
    %v93 = vstv %s92
    %v94 = vadd.f32 %v91, %v93
    %s95 = sld [smem:[#allocation3 + $0x5]]
    %v96 = vstv %s95
    %v97 = vmul.f32 %v60, %v96
    %v98 = vadd.f32 %v94, %v97
    %s99 = sld [smem:[#allocation3 + $0x6]]
    %v100 = vstv %s99
    %v101 = vmul.f32 %v63, %v100
    %v102 = vadd.f32 %v98, %v101
    %s103 = sld [smem:[#allocation3 + $0x7]]
    %v104 = vstv %s103
    %v105 = vmul.f32 %v66, %v104
    %v106 = vadd.f32 %v102, %v105
    %v107 = vmax.f32 %v106, 0.0
    %s108 = sld [smem:[#allocation7 + $0x1]]
    %v109 = vstv %s108
    %v110 = vmul.f32 %v107, %v109
    %v111 = vadd.f32 %v88, %v110
    %s112 = sld [smem:[#allocation3 + $0x8]]
    %v113 = vstv %s112
    %v114 = vmul.f32 %v57, %v113
    %s115 = sld [smem:[#allocation5 + $0x2]]
    %v116 = vstv %s115
    %v117 = vadd.f32 %v114, %v116
    %s118 = sld [smem:[#allocation3 + $0x9]]
    %v119 = vstv %s118
    %v120 = vmul.f32 %v60, %v119
    %v121 = vadd.f32 %v117, %v120
    %s122 = sld [smem:[#allocation3 + $0xa]]
    %v123 = vstv %s122
    %v124 = vmul.f32 %v63, %v123
    %v125 = vadd.f32 %v121, %v124
    %s126 = sld [smem:[#allocation3 + $0xb]]
    %v127 = vstv %s126
    %v128 = vmul.f32 %v66, %v127
    %v129 = vadd.f32 %v125, %v128
    %v130 = vmax.f32 %v129, 0.0
    %s131 = sld [smem:[#allocation7 + $0x2]]
    %v132 = vstv %s131
    %v133 = vmul.f32 %v130, %v132
    %v134 = vadd.f32 %v111, %v133
    %s135 = sld [smem:[#allocation3 + $0xc]]
    %v136 = vstv %s135
    %v137 = vmul.f32 %v57, %v136
    %s138 = sld [smem:[#allocation5 + $0x3]]
    %v139 = vstv %s138
    %v140 = vadd.f32 %v137, %v139
    %s141 = sld [smem:[#allocation3 + $0xd]]
    %v142 = vstv %s141
    %v143 = vmul.f32 %v60, %v142
    %v144 = vadd.f32 %v140, %v143
    %s145 = sld [smem:[#allocation3 + $0xe]]
    %v146 = vstv %s145
    %v147 = vmul.f32 %v63, %v146
    %v148 = vadd.f32 %v144, %v147
    %s149 = sld [smem:[#allocation3 + $0xf]]
    %v150 = vstv %s149
    %v151 = vmul.f32 %v66, %v150
    %v152 = vadd.f32 %v148, %v151
    %v153 = vmax.f32 %v152, 0.0
    %s154 = sld [smem:[#allocation7 + $0x3]]
    %v155 = vstv %s154
    %v156 = vmul.f32 %v153, %v155
    %v157 = vadd.f32 %v134, %v156
    %s158 = sld [smem:[#allocation3 + $0x10]]
    %v159 = vstv %s158
    %v160 = vmul.f32 %v57, %v159
    %s161 = sld [smem:[#allocation5 + $0x4]]
    %v162 = vstv %s161
    %v163 = vadd.f32 %v160, %v162
    %s164 = sld [smem:[#allocation3 + $0x11]]
    %v165 = vstv %s164
    %v166 = vmul.f32 %v60, %v165
    %v167 = vadd.f32 %v163, %v166
    %s168 = sld [smem:[#allocation3 + $0x12]]
    %v169 = vstv %s168
    %v170 = vmul.f32 %v63, %v169
    %v171 = vadd.f32 %v167, %v170
    %s172 = sld [smem:[#allocation3 + $0x13]]
    %v173 = vstv %s172
    %v174 = vmul.f32 %v66, %v173
    %v175 = vadd.f32 %v171, %v174
    %v176 = vmax.f32 %v175, 0.0
    %s177 = sld [smem:[#allocation7 + $0x4]]
    %v178 = vstv %s177
    %v179 = vmul.f32 %v176, %v178
    %v180 = vadd.f32 %v157, %v179
    %s181 = sld [smem:[#allocation3 + $0x14]]
    %v182 = vstv %s181
    %v183 = vmul.f32 %v57, %v182
    %s184 = sld [smem:[#allocation5 + $0x5]]
    %v185 = vstv %s184
    %v186 = vadd.f32 %v183, %v185
    %s187 = sld [smem:[#allocation3 + $0x15]]
    %v188 = vstv %s187
    %v189 = vmul.f32 %v60, %v188
    %v190 = vadd.f32 %v186, %v189
    %s191 = sld [smem:[#allocation3 + $0x16]]
    %v192 = vstv %s191
    %v193 = vmul.f32 %v63, %v192
    %v194 = vadd.f32 %v190, %v193
    %s195 = sld [smem:[#allocation3 + $0x17]]
    %v196 = vstv %s195
    %v197 = vmul.f32 %v66, %v196
    %v198 = vadd.f32 %v194, %v197
    %v199 = vmax.f32 %v198, 0.0
    %s200 = sld [smem:[#allocation7 + $0x5]]
    %v201 = vstv %s200
    %v202 = vmul.f32 %v199, %v201
    %v203 = vadd.f32 %v180, %v202
    %s204 = sld [smem:[#allocation3 + $0x18]]
    %v205 = vstv %s204
    %v206 = vmul.f32 %v57, %v205
    %s207 = sld [smem:[#allocation5 + $0x6]]
    %v208 = vstv %s207
    %v209 = vadd.f32 %v206, %v208
    %s210 = sld [smem:[#allocation3 + $0x19]]
    %v211 = vstv %s210
    %v212 = vmul.f32 %v60, %v211
    %v213 = vadd.f32 %v209, %v212
    %s214 = sld [smem:[#allocation3 + $0x1a]]
    %v215 = vstv %s214
    %v216 = vmul.f32 %v63, %v215
    %v217 = vadd.f32 %v213, %v216
    %s218 = sld [smem:[#allocation3 + $0x1b]]
    %v219 = vstv %s218
    %v220 = vmul.f32 %v66, %v219
    %v221 = vadd.f32 %v217, %v220
    %v222 = vmax.f32 %v221, 0.0
    %s223 = sld [smem:[#allocation7 + $0x6]]
    %v224 = vstv %s223
    %v225 = vmul.f32 %v222, %v224
    %v226 = vadd.f32 %v203, %v225
    %s227 = sld [smem:[#allocation3 + $0x1c]]
    %v228 = vstv %s227
    %v229 = vmul.f32 %v57, %v228
    %s230 = sld [smem:[#allocation5 + $0x7]]
    %v231 = vstv %s230
    %v232 = vadd.f32 %v229, %v231
    %s233 = sld [smem:[#allocation3 + $0x1d]]
    %v234 = vstv %s233
    %v235 = vmul.f32 %v60, %v234
    %v236 = vadd.f32 %v232, %v235
    %s237 = sld [smem:[#allocation3 + $0x1e]]
    %v238 = vstv %s237
    %v239 = vmul.f32 %v63, %v238
    %v240 = vadd.f32 %v236, %v239
    %s241 = sld [smem:[#allocation3 + $0x1f]]
    %v242 = vstv %s241
    %v243 = vmul.f32 %v66, %v242
    %v244 = vadd.f32 %v240, %v243
    %v245 = vmax.f32 %v244, 0.0
    %s246 = sld [smem:[#allocation7 + $0x7]]
    %v247 = vstv %s246
    %v248 = vmul.f32 %v245, %v247
    %v249 = vadd.f32 %v226, %v248
    %s250 = sld [smem:[#allocation3 + $0x20]]
    %v251 = vstv %s250
    %v252 = vmul.f32 %v57, %v251
    %s253 = sld [smem:[#allocation5 + $0x8]]
    %v254 = vstv %s253
    %v255 = vadd.f32 %v252, %v254
    %s256 = sld [smem:[#allocation3 + $0x21]]
    %v257 = vstv %s256
    %v258 = vmul.f32 %v60, %v257
    %v259 = vadd.f32 %v255, %v258
    %s260 = sld [smem:[#allocation3 + $0x22]]
    %v261 = vstv %s260
    %v262 = vmul.f32 %v63, %v261
    %v263 = vadd.f32 %v259, %v262
    %s264 = sld [smem:[#allocation3 + $0x23]]
    %v265 = vstv %s264
    %v266 = vmul.f32 %v66, %v265
    %v267 = vadd.f32 %v263, %v266
    %v268 = vmax.f32 %v267, 0.0
    %s269 = sld [smem:[#allocation7 + $0x8]]
    %v270 = vstv %s269
    %v271 = vmul.f32 %v268, %v270
    %v272 = vadd.f32 %v249, %v271
    %s273 = sld [smem:[#allocation3 + $0x24]]
    %v274 = vstv %s273
    %v275 = vmul.f32 %v57, %v274
    %s276 = sld [smem:[#allocation5 + $0x9]]
    %v277 = vstv %s276
    %v278 = vadd.f32 %v275, %v277
    %s279 = sld [smem:[#allocation3 + $0x25]]
    %v280 = vstv %s279
    %v281 = vmul.f32 %v60, %v280
    %v282 = vadd.f32 %v278, %v281
    %s283 = sld [smem:[#allocation3 + $0x26]]
    %v284 = vstv %s283
    %v285 = vmul.f32 %v63, %v284
    %v286 = vadd.f32 %v282, %v285
    %s287 = sld [smem:[#allocation3 + $0x27]]
    %v288 = vstv %s287
    %v289 = vmul.f32 %v66, %v288
    %v290 = vadd.f32 %v286, %v289
    %v291 = vmax.f32 %v290, 0.0
    %s292 = sld [smem:[#allocation7 + $0x9]]
    %v293 = vstv %s292
    %v294 = vmul.f32 %v291, %v293
    %v295 = vadd.f32 %v272, %v294
    %s296 = sld [smem:[#allocation3 + $0x28]]
    %v297 = vstv %s296
    %v298 = vmul.f32 %v57, %v297
    %s299 = sld [smem:[#allocation5 + $0xa]]
    %v300 = vstv %s299
    %v301 = vadd.f32 %v298, %v300
    %s302 = sld [smem:[#allocation3 + $0x29]]
    %v303 = vstv %s302
    %v304 = vmul.f32 %v60, %v303
    %v305 = vadd.f32 %v301, %v304
    %s306 = sld [smem:[#allocation3 + $0x2a]]
    %v307 = vstv %s306
    %v308 = vmul.f32 %v63, %v307
    %v309 = vadd.f32 %v305, %v308
    %s310 = sld [smem:[#allocation3 + $0x2b]]
    %v311 = vstv %s310
    %v312 = vmul.f32 %v66, %v311
    %v313 = vadd.f32 %v309, %v312
    %v314 = vmax.f32 %v313, 0.0
    %s315 = sld [smem:[#allocation7 + $0xa]]
    %v316 = vstv %s315
    %v317 = vmul.f32 %v314, %v316
    %v318 = vadd.f32 %v295, %v317
    %s319 = sld [smem:[#allocation3 + $0x2c]]
    %v320 = vstv %s319
    %v321 = vmul.f32 %v57, %v320
    %s322 = sld [smem:[#allocation5 + $0xb]]
    %v323 = vstv %s322
    %v324 = vadd.f32 %v321, %v323
    %s325 = sld [smem:[#allocation3 + $0x2d]]
    %v326 = vstv %s325
    %v327 = vmul.f32 %v60, %v326
    %v328 = vadd.f32 %v324, %v327
    %s329 = sld [smem:[#allocation3 + $0x2e]]
    %v330 = vstv %s329
    %v331 = vmul.f32 %v63, %v330
    %v332 = vadd.f32 %v328, %v331
    %s333 = sld [smem:[#allocation3 + $0x2f]]
    %v334 = vstv %s333
    %v335 = vmul.f32 %v66, %v334
    %v336 = vadd.f32 %v332, %v335
    %v337 = vmax.f32 %v336, 0.0
    %s338 = sld [smem:[#allocation7 + $0xb]]
    %v339 = vstv %s338
    %v340 = vmul.f32 %v337, %v339
    %v341 = vadd.f32 %v318, %v340
    %s342 = sld [smem:[#allocation3 + $0x30]]
    %v343 = vstv %s342
    %v344 = vmul.f32 %v57, %v343
    %s345 = sld [smem:[#allocation5 + $0xc]]
    %v346 = vstv %s345
    %v347 = vadd.f32 %v344, %v346
    %s348 = sld [smem:[#allocation3 + $0x31]]
    %v349 = vstv %s348
    %v350 = vmul.f32 %v60, %v349
    %v351 = vadd.f32 %v347, %v350
    %s352 = sld [smem:[#allocation3 + $0x32]]
    %v353 = vstv %s352
    %v354 = vmul.f32 %v63, %v353
    %v355 = vadd.f32 %v351, %v354
    %s356 = sld [smem:[#allocation3 + $0x33]]
    %v357 = vstv %s356
    %v358 = vmul.f32 %v66, %v357
    %v359 = vadd.f32 %v355, %v358
    %v360 = vmax.f32 %v359, 0.0
    %s361 = sld [smem:[#allocation7 + $0xc]]
    %v362 = vstv %s361
    %v363 = vmul.f32 %v360, %v362
    %v364 = vadd.f32 %v341, %v363
    %s365 = sld [smem:[#allocation3 + $0x34]]
    %v366 = vstv %s365
    %v367 = vmul.f32 %v57, %v366
    %s368 = sld [smem:[#allocation5 + $0xd]]
    %v369 = vstv %s368
    %v370 = vadd.f32 %v367, %v369
    %s371 = sld [smem:[#allocation3 + $0x35]]
    %v372 = vstv %s371
    %v373 = vmul.f32 %v60, %v372
    %v374 = vadd.f32 %v370, %v373
    %s375 = sld [smem:[#allocation3 + $0x36]]
    %v376 = vstv %s375
    %v377 = vmul.f32 %v63, %v376
    %v378 = vadd.f32 %v374, %v377
    %s379 = sld [smem:[#allocation3 + $0x37]]
    %v380 = vstv %s379
    %v381 = vmul.f32 %v66, %v380
    %v382 = vadd.f32 %v378, %v381
    %v383 = vmax.f32 %v382, 0.0
    %s384 = sld [smem:[#allocation7 + $0xd]]
    %v385 = vstv %s384
    %v386 = vmul.f32 %v383, %v385
    %v387 = vadd.f32 %v364, %v386
    %s388 = sld [smem:[#allocation3 + $0x38]]
    %v389 = vstv %s388
    %v390 = vmul.f32 %v57, %v389
    %s391 = sld [smem:[#allocation5 + $0xe]]
    %v392 = vstv %s391
    %v393 = vadd.f32 %v390, %v392
    %s394 = sld [smem:[#allocation3 + $0x39]]
    %v395 = vstv %s394
    %v396 = vmul.f32 %v60, %v395
    %v397 = vadd.f32 %v393, %v396
    %s398 = sld [smem:[#allocation3 + $0x3a]]
    %v399 = vstv %s398
    %v400 = vmul.f32 %v63, %v399
    %v401 = vadd.f32 %v397, %v400
    %s402 = sld [smem:[#allocation3 + $0x3b]]
    %v403 = vstv %s402
    %v404 = vmul.f32 %v66, %v403
    %v405 = vadd.f32 %v401, %v404
    %v406 = vmax.f32 %v405, 0.0
    %s407 = sld [smem:[#allocation7 + $0xe]]
    %v408 = vstv %s407
    %v409 = vmul.f32 %v406, %v408
    %v410 = vadd.f32 %v387, %v409
    %s411 = sld [smem:[#allocation3 + $0x3c]]
    %v412 = vstv %s411
    %v413 = vmul.f32 %v57, %v412
    %s414 = sld [smem:[#allocation5 + $0xf]]
    %v415 = vstv %s414
    %v416 = vadd.f32 %v413, %v415
    %s417 = sld [smem:[#allocation3 + $0x3d]]
    %v418 = vstv %s417
    %v419 = vmul.f32 %v60, %v418
    %v420 = vadd.f32 %v416, %v419
    %s421 = sld [smem:[#allocation3 + $0x3e]]
    %v422 = vstv %s421
    %v423 = vmul.f32 %v63, %v422
    %v424 = vadd.f32 %v420, %v423
    %s425 = sld [smem:[#allocation3 + $0x3f]]
    %v426 = vstv %s425
    %v427 = vmul.f32 %v66, %v426
    %v428 = vadd.f32 %v424, %v427
    %v429 = vmax.f32 %v428, 0.0
    %s430 = sld [smem:[#allocation7 + $0xf]]
    %v431 = vstv %s430
    %v432 = vmul.f32 %v429, %v431
    %v433 = vadd.f32 %v410, %v432
    %s434 = sld [smem:[#allocation3 + $0x40]]
    %v435 = vstv %s434
    %v436 = vmul.f32 %v57, %v435
    %s437 = sld [smem:[#allocation5 + $0x10]]
    %v438 = vstv %s437
    %v439 = vadd.f32 %v436, %v438
    %s440 = sld [smem:[#allocation3 + $0x41]]
    %v441 = vstv %s440
    %v442 = vmul.f32 %v60, %v441
    %v443 = vadd.f32 %v439, %v442
    %s444 = sld [smem:[#allocation3 + $0x42]]
    %v445 = vstv %s444
    %v446 = vmul.f32 %v63, %v445
    %v447 = vadd.f32 %v443, %v446
    %s448 = sld [smem:[#allocation3 + $0x43]]
    %v449 = vstv %s448
    %v450 = vmul.f32 %v66, %v449
    %v451 = vadd.f32 %v447, %v450
    %v452 = vmax.f32 %v451, 0.0
    %s453 = sld [smem:[#allocation7 + $0x10]]
    %v454 = vstv %s453
    %v455 = vmul.f32 %v452, %v454
    %v456 = vadd.f32 %v433, %v455
    %s457 = sld [smem:[#allocation3 + $0x44]]
    %v458 = vstv %s457
    %v459 = vmul.f32 %v57, %v458
    %s460 = sld [smem:[#allocation5 + $0x11]]
    %v461 = vstv %s460
    %v462 = vadd.f32 %v459, %v461
    %s463 = sld [smem:[#allocation3 + $0x45]]
    %v464 = vstv %s463
    %v465 = vmul.f32 %v60, %v464
    %v466 = vadd.f32 %v462, %v465
    %s467 = sld [smem:[#allocation3 + $0x46]]
    %v468 = vstv %s467
    %v469 = vmul.f32 %v63, %v468
    %v470 = vadd.f32 %v466, %v469
    %s471 = sld [smem:[#allocation3 + $0x47]]
    %v472 = vstv %s471
    %v473 = vmul.f32 %v66, %v472
    %v474 = vadd.f32 %v470, %v473
    %v475 = vmax.f32 %v474, 0.0
    %s476 = sld [smem:[#allocation7 + $0x11]]
    %v477 = vstv %s476
    %v478 = vmul.f32 %v475, %v477
    %v479 = vadd.f32 %v456, %v478
    %s480 = sld [smem:[#allocation3 + $0x48]]
    %v481 = vstv %s480
    %v482 = vmul.f32 %v57, %v481
    %s483 = sld [smem:[#allocation5 + $0x12]]
    %v484 = vstv %s483
    %v485 = vadd.f32 %v482, %v484
    %s486 = sld [smem:[#allocation3 + $0x49]]
    %v487 = vstv %s486
    %v488 = vmul.f32 %v60, %v487
    %v489 = vadd.f32 %v485, %v488
    %s490 = sld [smem:[#allocation3 + $0x4a]]
    %v491 = vstv %s490
    %v492 = vmul.f32 %v63, %v491
    %v493 = vadd.f32 %v489, %v492
    %s494 = sld [smem:[#allocation3 + $0x4b]]
    %v495 = vstv %s494
    %v496 = vmul.f32 %v66, %v495
    %v497 = vadd.f32 %v493, %v496
    %v498 = vmax.f32 %v497, 0.0
    %s499 = sld [smem:[#allocation7 + $0x12]]
    %v500 = vstv %s499
    %v501 = vmul.f32 %v498, %v500
    %v502 = vadd.f32 %v479, %v501
    %s503 = sld [smem:[#allocation3 + $0x4c]]
    %v504 = vstv %s503
    %v505 = vmul.f32 %v57, %v504
    %s506 = sld [smem:[#allocation5 + $0x13]]
    %v507 = vstv %s506
    %v508 = vadd.f32 %v505, %v507
    %s509 = sld [smem:[#allocation3 + $0x4d]]
    %v510 = vstv %s509
    %v511 = vmul.f32 %v60, %v510
    %v512 = vadd.f32 %v508, %v511
    %s513 = sld [smem:[#allocation3 + $0x4e]]
    %v514 = vstv %s513
    %v515 = vmul.f32 %v63, %v514
    %v516 = vadd.f32 %v512, %v515
    %s517 = sld [smem:[#allocation3 + $0x4f]]
    %v518 = vstv %s517
    %v519 = vmul.f32 %v66, %v518
    %v520 = vadd.f32 %v516, %v519
    %v521 = vmax.f32 %v520, 0.0
    %s522 = sld [smem:[#allocation7 + $0x13]]
    %v523 = vstv %s522
    %v524 = vmul.f32 %v521, %v523
    %v525 = vadd.f32 %v502, %v524
    %s526 = sld [smem:[#allocation2]]
    %v527 = vstv %s526
    %v528 = vadd.f32 %v525, %v527
    %v529 = vmax.f32 %v528, 0.0
    %530 = vst [vmem:[%s5] sm:$0xff] %v529
    // Predicated region
    $region34: #{baseline_value_forward.1} parent=1 // pred_check
      _
    $region35: #{baseline_value_forward.1} parent=1 // pred_check_branch
      %532 = sbr.rel (0) target = $region37
    $region36: #{baseline_value_forward.1} parent=1 // pred_region
      _
    $region37: #{baseline_value_forward.1} parent=1 // pred_fallthru
      _
    // Predicated region
    $region38: #{baseline_value_forward.1} parent=1 // pred_check
      _
    $region39: #{baseline_value_forward.1} parent=1 // pred_check_branch
      %534 = sbr.rel (0) target = $region41
    $region40: #{baseline_value_forward.1} parent=1 // pred_region
      _
    $region41: #{baseline_value_forward.1} parent=1 // pred_fallthru
      _
    %535 = vsyncpa [#allocation4], 1
    %536 = vsyncpa [#allocation6], 1

</llo_original>
